<compile_context>
chip_gen: v7x
topology: tpu7x:2x2x1
jax: 0.10.0
libtpu: 0.0.40
codegen_flags: <defaults>
</compile_context>

<pallas_src>
import functools

import jax
import jax.numpy as jnp
from jax.experimental import pallas as pl
from jax.experimental.pallas import tpu as pltpu


_TR = 256     # sublane rows per tile (multiple of 8)
_LANE = 512   # lane width per tile (multiple of 128) -> lane-dense stores


def _swap_noise_kernel(threshold, x_ref, xswap_ref, bits_ref, o_ref):
    """Elementwise swap-noise select on one lane-dense (_TR, _LANE) tile.

    threshold : python int, = round(doping_ratio * 2**24)
    x_ref     : original values
    xswap_ref : values from the permuted rows (gathered in the wrapper)
    bits_ref  : uint32 random bits, one draw per element
    o_ref     : output tile
    """
    # Bernoulli(doping_ratio) mask computed entirely in integer space:
    # 24 random bits compared against an integer threshold.
    u24 = jnp.bitwise_and(bits_ref[...], jnp.uint32(0x00FFFFFF))
    doping_mask = u24 < jnp.uint32(threshold)
    o_ref[...] = jnp.where(doping_mask, xswap_ref[...], x_ref[...]).astype(o_ref.dtype)


def swap_noise_adder(x, *, doping_ratio=0.15, doping_scale="global", key):
    """JAX/Pallas equivalent of SwapNoiseAdder.forward (global doping scale)."""
    if doping_scale != "global":
        # TODO(synk): 'in-batch' doping_scale (per-batch permutation over n_series) not implemented.
        raise NotImplementedError("only doping_scale='global' is implemented")

    B, N, T = x.shape
    R = B * N
    x2d = x.reshape(R, T)

    k_perm, k_bits = jax.random.split(key)

    # torch.randperm equivalent + row gather as one dense XLA gather in the
    # wrapper (cheaper and simpler than R tiny per-row DMAs inside the kernel).
    perm = jax.random.permutation(k_perm, R)
    x_swapped = jnp.take(x2d, perm, axis=0)

    # Flatten + pad everything to a common lane-dense (rows, _LANE) slab so the
    # kernel sees big aligned tiles regardless of T.  The op is i.i.d. per
    # element, so any shared layout of x / x_swapped / bits is valid.
    total = R * T
    block_elems = _TR * _LANE
    n_blocks = -(-total // block_elems)
    padded = n_blocks * block_elems
    pad = padded - total

    def to_slab(a):
        return jnp.pad(a.reshape(-1), (0, pad)).reshape(n_blocks * _TR, _LANE)

    x_slab = to_slab(x2d)
    xs_slab = to_slab(x_swapped)
    bits = jax.random.bits(k_bits, (n_blocks * _TR, _LANE), dtype=jnp.uint32)

    threshold = int(round(float(doping_ratio) * (1 << 24)))

    blk = pl.BlockSpec((_TR, _LANE), lambda i: (i, 0))
    out_slab = pl.pallas_call(
        functools.partial(_swap_noise_kernel, threshold),
        out_shape=jax.ShapeDtypeStruct((n_blocks * _TR, _LANE), x.dtype),
        grid=(n_blocks,),
        in_specs=[blk, blk, blk],
        out_specs=blk,
        compiler_params=pltpu.CompilerParams(
            dimension_semantics=("parallel",)),
    )(x_slab, xs_slab, bits)

    return out_slab.reshape(-1)[:total].reshape(B, N, T)


if __name__ == "__main__":
    key = jax.random.PRNGKey(0)
    k_x, k_noise = jax.random.split(key)

    # Small shapes consistent with the module: (batch, n_series, t_window)
    B, N, T = 2, 4, 16
    x = jax.random.normal(k_x, (B, N, T), dtype=jnp.float32)

    out = swap_noise_adder(x, doping_ratio=0.15, doping_scale="global", key=k_noise)
    out = jax.block_until_ready(out)

    # Sanity: shape/dtype preserved, and every output element equals either the
    # original element or the element from the permuted row (swap semantics).
    assert out.shape == x.shape and out.dtype == x.dtype
    k_perm, _ = jax.random.split(k_noise)          # same split as the wrapper
    perm = jax.random.permutation(k_perm, B * N)
    x2d = x.reshape(B * N, T)
    x_swapped = x2d[perm]
    out2d = out.reshape(B * N, T)
    ok = jnp.all((out2d == x2d) | (out2d == x_swapped))
    assert bool(ok), "output contains values not explainable by swap-noise semantics"

    print("KERNEL_OK")
</pallas_src>

<mosaic_0001>
module attributes {stable_mosaic.version = 11 : i64} {
  func.func @_swap_noise_kernel(%arg0: i32, %arg1: memref<256x512xf32, #tpu.memory_space<vmem>>, %arg2: memref<256x512xf32, #tpu.memory_space<vmem>>, %arg3: memref<256x512xi32, #tpu.memory_space<vmem>>, %arg4: memref<256x512xf32, #tpu.memory_space<vmem>>) attributes {dimension_semantics = [#tpu.dimension_semantics<parallel>], iteration_bounds = array<i64: 1>, scalar_prefetch = 0 : i64, scratch_operands = 0 : i64, tpu.core_type = #tpu.core_type<tc>, window_params = [{transform_indices = @transform_0, window_bounds = array<i64: 256, 512>}, {transform_indices = @transform_1, window_bounds = array<i64: 256, 512>}, {transform_indices = @transform_2, window_bounds = array<i64: 256, 512>}, {transform_indices = @transform_3, window_bounds = array<i64: 256, 512>}]} {
    %c0 = arith.constant 0 : index
    %c0_0 = arith.constant 0 : index
    %0 = vector.load %arg3[%c0, %c0_0] : memref<256x512xi32, #tpu.memory_space<vmem>>, vector<256x512xi32>
    %c16777215_i32 = arith.constant 16777215 : i32
    %1 = vector.broadcast %c16777215_i32 : i32 to vector<256x512xi32>
    %2 = arith.andi %0, %1 : vector<256x512xi32>
    %c2516582_i32 = arith.constant 2516582 : i32
    %3 = vector.broadcast %c2516582_i32 : i32 to vector<256x512xi32>
    %4 = arith.cmpi ult, %2, %3 : vector<256x512xi32>
    %c0_1 = arith.constant 0 : index
    %c0_2 = arith.constant 0 : index
    %5 = vector.load %arg2[%c0_1, %c0_2] : memref<256x512xf32, #tpu.memory_space<vmem>>, vector<256x512xf32>
    %c0_3 = arith.constant 0 : index
    %c0_4 = arith.constant 0 : index
    %6 = vector.load %arg1[%c0_3, %c0_4] : memref<256x512xf32, #tpu.memory_space<vmem>>, vector<256x512xf32>
    %7 = arith.select %4, %5, %6 : vector<256x512xi1>, vector<256x512xf32>
    %c0_5 = arith.constant 0 : index
    %c0_6 = arith.constant 0 : index
    %8 = vector.load %arg4[%c0_5, %c0_6] : memref<256x512xf32, #tpu.memory_space<vmem>>, vector<256x512xf32>
    tpu.vector_store %arg4[%c0_5, %c0_6], %7 {strides = array<i32>} : memref<256x512xf32, #tpu.memory_space<vmem>>, vector<256x512xf32>,
    return
  }
  func.func @transform_0(%arg0: i32) -> (i32, i32) {
    %c0_i32 = arith.constant 0 : i32
    %c0_i32_0 = arith.constant 0 : i32
    return %arg0, %c0_i32 : i32, i32
  }
  func.func @transform_1(%arg0: i32) -> (i32, i32) {
    %c0_i32 = arith.constant 0 : i32
    %c0_i32_0 = arith.constant 0 : i32
    return %arg0, %c0_i32 : i32, i32
  }
  func.func @transform_2(%arg0: i32) -> (i32, i32) {
    %c0_i32 = arith.constant 0 : i32
    %c0_i32_0 = arith.constant 0 : i32
    return %arg0, %c0_i32 : i32, i32
  }
  func.func @transform_3(%arg0: i32) -> (i32, i32) {
    %c0_i32 = arith.constant 0 : i32
    %c0_i32_0 = arith.constant 0 : i32
    return %arg0, %c0_i32 : i32, i32
  }
}

</mosaic_0001>

<llo_original>
// kernel: tpu_custom_call.1
$region0: #{tpu_custom_call.1}
  #allocation0 [shape = 'u32[]', space=smem, size = 0x4, offset = 0x4, fixed_abs, tag = 'smem constant byte address 0x4 - core index']
  #allocation1 [shape = 'u32[144,128]{1,0:T(1,128)}', space=vmem, size = 0x12000, scoped, tag = 'internal scratch']
  %s0 = inlined_call_operand.hbm [shape: f32[256,512], index: 0, kind: input, shape index: {}]
  %s1 = inlined_call_operand.hbm [shape: f32[256,512], index: 1, kind: input, shape index: {}]
  %s2 = inlined_call_operand.hbm [shape: u32[256,512], index: 2, kind: input, shape index: {}]
  %s3 = inlined_call_operand.hbm [shape: f32[256,512], index: 3, kind: output, shape index: {}]
  %s4 = sld [smem:[#allocation0]]
  $region34: #{tpu_custom_call.1} parent=0
    _
  %s6 = ssub.s32 1, %s4
  %s7 = scalar_select 0, %s6, %s4
  $region1: #{tpu_custom_call.1} parent=0
    #allocation2 [shape = 'u8[524288]{0}', space=vmem, size = 0x80000, scoped, tag = 'input window, operand 0, single buffered']
    #allocation3 [shape = 's32[1]{0}', space=sflag, size = 0x4, scoped, tag = 'scoped memory for tpu_custom_call.1']
    #allocation4 [shape = 's32[1]{0}', space=sflag, size = 0x4, scoped, tag = 'scoped memory for tpu_custom_call.1']
    #allocation5 [shape = 'u8[524288]{0}', space=vmem, size = 0x80000, scoped, tag = 'input window, operand 1, single buffered']
    #allocation6 [shape = 's32[1]{0}', space=sflag, size = 0x4, scoped, tag = 'scoped memory for tpu_custom_call.1']
    #allocation7 [shape = 'u8[524288]{0}', space=vmem, size = 0x80000, scoped, tag = 'input window, operand 2, single buffered']
    #allocation8 [shape = 'u8[524288]{0}', space=vmem, size = 0x80000, scoped, tag = 'output window, operand 0, single buffered']
    %8 = vsyncpa [#allocation3], 0
    %9 = vsyncpa [#allocation6], 0
    %10 = vsyncpa [#allocation4], 0
    // Predicated region
    $region2: #{tpu_custom_call.1} parent=1 // pred_check
      _
    $region3: #{tpu_custom_call.1} parent=1 // pred_check_branch
      %12 = sbr.rel (0) target = $region5
    $region4: #{tpu_custom_call.1} parent=1 // pred_region
      %s14 = ssub.s32 16384, 16384
      %15 = vsyncadd [#allocation3], %s14
      %s16 = sshll.u32 [#allocation2], 4
      %s17 = int_to_ptr.vmem [resolvable:$true] %s16
      %22 = dma.hbm_to_vmem [thread:$0]  %s0, 16384, %s17, [#allocation3], 512, 512, 32
    $region5: #{tpu_custom_call.1} parent=1 // pred_fallthru
      _
    // Predicated region
    $region6: #{tpu_custom_call.1} parent=1 // pred_check
      _
    $region7: #{tpu_custom_call.1} parent=1 // pred_check_branch
      %24 = sbr.rel (0) target = $region9
    $region8: #{tpu_custom_call.1} parent=1 // pred_region
      %s26 = ssub.s32 16384, 16384
      %27 = vsyncadd [#allocation6], %s26
      %s28 = sshll.u32 [#allocation5], 4
      %s29 = int_to_ptr.vmem [resolvable:$true] %s28
      %34 = dma.hbm_to_vmem [thread:$0]  %s1, 16384, %s29, [#allocation6], 512, 512, 32
    $region9: #{tpu_custom_call.1} parent=1 // pred_fallthru
      _
    // Predicated region
    $region10: #{tpu_custom_call.1} parent=1 // pred_check
      _
    $region11: #{tpu_custom_call.1} parent=1 // pred_check_branch
      %36 = sbr.rel (0) target = $region13
    $region12: #{tpu_custom_call.1} parent=1 // pred_region
      %s38 = ssub.s32 16384, 16384
      %39 = vsyncadd [#allocation6], %s38
      %s40 = sshll.u32 [#allocation7], 4
      %s41 = int_to_ptr.vmem [resolvable:$true] %s40
      %46 = dma.hbm_to_vmem [thread:$0]  %s2, 16384, %s41, [#allocation6], 512, 512, 32
    $region13: #{tpu_custom_call.1} parent=1 // pred_fallthru
      _
    // Predicated region
    $region14: #{tpu_custom_call.1} parent=1 // pred_check
      _
    $region15: #{tpu_custom_call.1} parent=1 // pred_check_branch
      %48 = sbr.rel (0) target = $region17
    $region16: #{tpu_custom_call.1} parent=1 // pred_region
      %49 = dma.done [#allocation3], 16384
    $region17: #{tpu_custom_call.1} parent=1 // pred_fallthru
      _
    // Predicated region
    $region18: #{tpu_custom_call.1} parent=1 // pred_check
      _
    $region19: #{tpu_custom_call.1} parent=1 // pred_check_branch
      %51 = sbr.rel (0) target = $region21
    $region20: #{tpu_custom_call.1} parent=1 // pred_region
      %52 = dma.done [#allocation6], 16384
    $region21: #{tpu_custom_call.1} parent=1 // pred_fallthru
      _
    // Predicated region
    $region22: #{tpu_custom_call.1} parent=1 // pred_check
      _
    $region23: #{tpu_custom_call.1} parent=1 // pred_check_branch
      %54 = sbr.rel (0) target = $region25
    $region24: #{tpu_custom_call.1} parent=1 // pred_region
      %55 = dma.done [#allocation6], 16384
    $region25: #{tpu_custom_call.1} parent=1 // pred_fallthru
      _
    %v56 = vld [vmem:[#allocation7] sm:$0xff]
    %v57 = vld [vmem:[#allocation7 + $0x8] sm:$0xff]
    %v58 = vld [vmem:[#allocation7 + $0x10] sm:$0xff]
    %v59 = vld [vmem:[#allocation7 + $0x18] sm:$0xff]
    %v60 = vld [vmem:[#allocation7 + $0x20] sm:$0xff]
    %v61 = vld [vmem:[#allocation7 + $0x28] sm:$0xff]
    %v62 = vld [vmem:[#allocation7 + $0x30] sm:$0xff]
    %v63 = vld [vmem:[#allocation7 + $0x38] sm:$0xff]
    %v64 = vld [vmem:[#allocation7 + $0x40] sm:$0xff]
    %v65 = vld [vmem:[#allocation7 + $0x48] sm:$0xff]
    %v66 = vld [vmem:[#allocation7 + $0x50] sm:$0xff]
    %v67 = vld [vmem:[#allocation7 + $0x58] sm:$0xff]
    %v68 = vld [vmem:[#allocation7 + $0x60] sm:$0xff]
    %v69 = vld [vmem:[#allocation7 + $0x68] sm:$0xff]
    %v70 = vld [vmem:[#allocation7 + $0x70] sm:$0xff]
    %v71 = vld [vmem:[#allocation7 + $0x78] sm:$0xff]
    %v72 = vld [vmem:[#allocation7 + $0x80] sm:$0xff]
    %v73 = vld [vmem:[#allocation7 + $0x88] sm:$0xff]
    %v74 = vld [vmem:[#allocation7 + $0x90] sm:$0xff]
    %v75 = vld [vmem:[#allocation7 + $0x98] sm:$0xff]
    %v76 = vld [vmem:[#allocation7 + $0xa0] sm:$0xff]
    %v77 = vld [vmem:[#allocation7 + $0xa8] sm:$0xff]
    %v78 = vld [vmem:[#allocation7 + $0xb0] sm:$0xff]
    %v79 = vld [vmem:[#allocation7 + $0xb8] sm:$0xff]
    %v80 = vld [vmem:[#allocation7 + $0xc0] sm:$0xff]
    %v81 = vld [vmem:[#allocation7 + $0xc8] sm:$0xff]
    %v82 = vld [vmem:[#allocation7 + $0xd0] sm:$0xff]
    %v83 = vld [vmem:[#allocation7 + $0xd8] sm:$0xff]
    %v84 = vld [vmem:[#allocation7 + $0xe0] sm:$0xff]
    %v85 = vld [vmem:[#allocation7 + $0xe8] sm:$0xff]
    %v86 = vld [vmem:[#allocation7 + $0xf0] sm:$0xff]
    %v87 = vld [vmem:[#allocation7 + $0xf8] sm:$0xff]
    %v88 = vld [vmem:[#allocation7 + $0x100] sm:$0xff]
    %v89 = vld [vmem:[#allocation7 + $0x108] sm:$0xff]
    %v90 = vld [vmem:[#allocation7 + $0x110] sm:$0xff]
    %v91 = vld [vmem:[#allocation7 + $0x118] sm:$0xff]
    %v92 = vld [vmem:[#allocation7 + $0x120] sm:$0xff]
    %v93 = vld [vmem:[#allocation7 + $0x128] sm:$0xff]
    %v94 = vld [vmem:[#allocation7 + $0x130] sm:$0xff]
    %v95 = vld [vmem:[#allocation7 + $0x138] sm:$0xff]
    %v96 = vld [vmem:[#allocation7 + $0x140] sm:$0xff]
    %v97 = vld [vmem:[#allocation7 + $0x148] sm:$0xff]
    %v98 = vld [vmem:[#allocation7 + $0x150] sm:$0xff]
    %v99 = vld [vmem:[#allocation7 + $0x158] sm:$0xff]
    %v100 = vld [vmem:[#allocation7 + $0x160] sm:$0xff]
    %v101 = vld [vmem:[#allocation7 + $0x168] sm:$0xff]
    %v102 = vld [vmem:[#allocation7 + $0x170] sm:$0xff]
    %v103 = vld [vmem:[#allocation7 + $0x178] sm:$0xff]
    %v104 = vld [vmem:[#allocation7 + $0x180] sm:$0xff]
    %v105 = vld [vmem:[#allocation7 + $0x188] sm:$0xff]
    %v106 = vld [vmem:[#allocation7 + $0x190] sm:$0xff]
    %v107 = vld [vmem:[#allocation7 + $0x198] sm:$0xff]
    %v108 = vld [vmem:[#allocation7 + $0x1a0] sm:$0xff]
    %v109 = vld [vmem:[#allocation7 + $0x1a8] sm:$0xff]
    %v110 = vld [vmem:[#allocation7 + $0x1b0] sm:$0xff]
    %v111 = vld [vmem:[#allocation7 + $0x1b8] sm:$0xff]
    %v112 = vld [vmem:[#allocation7 + $0x1c0] sm:$0xff]
    %v113 = vld [vmem:[#allocation7 + $0x1c8] sm:$0xff]
    %v114 = vld [vmem:[#allocation7 + $0x1d0] sm:$0xff]
    %v115 = vld [vmem:[#allocation7 + $0x1d8] sm:$0xff]
    %v116 = vld [vmem:[#allocation7 + $0x1e0] sm:$0xff]
    %v117 = vld [vmem:[#allocation7 + $0x1e8] sm:$0xff]
    %v118 = vld [vmem:[#allocation7 + $0x1f0] sm:$0xff]
    %v119 = vld [vmem:[#allocation7 + $0x1f8] sm:$0xff]
    %v120 = vld [vmem:[#allocation7 + $0x200] sm:$0xff]
    %v121 = vld [vmem:[#allocation7 + $0x208] sm:$0xff]
    %v122 = vld [vmem:[#allocation7 + $0x210] sm:$0xff]
    %v123 = vld [vmem:[#allocation7 + $0x218] sm:$0xff]
    %v124 = vld [vmem:[#allocation7 + $0x220] sm:$0xff]
    %v125 = vld [vmem:[#allocation7 + $0x228] sm:$0xff]
    %v126 = vld [vmem:[#allocation7 + $0x230] sm:$0xff]
    %v127 = vld [vmem:[#allocation7 + $0x238] sm:$0xff]
    %v128 = vld [vmem:[#allocation7 + $0x240] sm:$0xff]
    %v129 = vld [vmem:[#allocation7 + $0x248] sm:$0xff]
    %v130 = vld [vmem:[#allocation7 + $0x250] sm:$0xff]
    %v131 = vld [vmem:[#allocation7 + $0x258] sm:$0xff]
    %v132 = vld [vmem:[#allocation7 + $0x260] sm:$0xff]
    %v133 = vld [vmem:[#allocation7 + $0x268] sm:$0xff]
    %v134 = vld [vmem:[#allocation7 + $0x270] sm:$0xff]
    %v135 = vld [vmem:[#allocation7 + $0x278] sm:$0xff]
    %v136 = vld [vmem:[#allocation7 + $0x280] sm:$0xff]
    %v137 = vld [vmem:[#allocation7 + $0x288] sm:$0xff]
    %v138 = vld [vmem:[#allocation7 + $0x290] sm:$0xff]
    %v139 = vld [vmem:[#allocation7 + $0x298] sm:$0xff]
    %v140 = vld [vmem:[#allocation7 + $0x2a0] sm:$0xff]
    %v141 = vld [vmem:[#allocation7 + $0x2a8] sm:$0xff]
    %v142 = vld [vmem:[#allocation7 + $0x2b0] sm:$0xff]
    %v143 = vld [vmem:[#allocation7 + $0x2b8] sm:$0xff]
    %v144 = vld [vmem:[#allocation7 + $0x2c0] sm:$0xff]
    %v145 = vld [vmem:[#allocation7 + $0x2c8] sm:$0xff]
    %v146 = vld [vmem:[#allocation7 + $0x2d0] sm:$0xff]
    %v147 = vld [vmem:[#allocation7 + $0x2d8] sm:$0xff]
    %v148 = vld [vmem:[#allocation7 + $0x2e0] sm:$0xff]
    %v149 = vld [vmem:[#allocation7 + $0x2e8] sm:$0xff]
    %v150 = vld [vmem:[#allocation7 + $0x2f0] sm:$0xff]
    %v151 = vld [vmem:[#allocation7 + $0x2f8] sm:$0xff]
    %v152 = vld [vmem:[#allocation7 + $0x300] sm:$0xff]
    %v153 = vld [vmem:[#allocation7 + $0x308] sm:$0xff]
    %v154 = vld [vmem:[#allocation7 + $0x310] sm:$0xff]
    %v155 = vld [vmem:[#allocation7 + $0x318] sm:$0xff]
    %v156 = vld [vmem:[#allocation7 + $0x320] sm:$0xff]
    %v157 = vld [vmem:[#allocation7 + $0x328] sm:$0xff]
    %v158 = vld [vmem:[#allocation7 + $0x330] sm:$0xff]
    %v159 = vld [vmem:[#allocation7 + $0x338] sm:$0xff]
    %v160 = vld [vmem:[#allocation7 + $0x340] sm:$0xff]
    %v161 = vld [vmem:[#allocation7 + $0x348] sm:$0xff]
    %v162 = vld [vmem:[#allocation7 + $0x350] sm:$0xff]
    %v163 = vld [vmem:[#allocation7 + $0x358] sm:$0xff]
    %v164 = vld [vmem:[#allocation7 + $0x360] sm:$0xff]
    %v165 = vld [vmem:[#allocation7 + $0x368] sm:$0xff]
    %v166 = vld [vmem:[#allocation7 + $0x370] sm:$0xff]
    %v167 = vld [vmem:[#allocation7 + $0x378] sm:$0xff]
    %v168 = vld [vmem:[#allocation7 + $0x380] sm:$0xff]
    %v169 = vld [vmem:[#allocation7 + $0x388] sm:$0xff]
    %v170 = vld [vmem:[#allocation7 + $0x390] sm:$0xff]
    %v171 = vld [vmem:[#allocation7 + $0x398] sm:$0xff]
    %v172 = vld [vmem:[#allocation7 + $0x3a0] sm:$0xff]
    %v173 = vld [vmem:[#allocation7 + $0x3a8] sm:$0xff]
    %v174 = vld [vmem:[#allocation7 + $0x3b0] sm:$0xff]
    %v175 = vld [vmem:[#allocation7 + $0x3b8] sm:$0xff]
    %v176 = vld [vmem:[#allocation7 + $0x3c0] sm:$0xff]
    %v177 = vld [vmem:[#allocation7 + $0x3c8] sm:$0xff]
    %v178 = vld [vmem:[#allocation7 + $0x3d0] sm:$0xff]
    %v179 = vld [vmem:[#allocation7 + $0x3d8] sm:$0xff]
    %v180 = vld [vmem:[#allocation7 + $0x3e0] sm:$0xff]
    %v181 = vld [vmem:[#allocation7 + $0x3e8] sm:$0xff]
    %v182 = vld [vmem:[#allocation7 + $0x3f0] sm:$0xff]
    %v183 = vld [vmem:[#allocation7 + $0x3f8] sm:$0xff]
    %v184 = vand.u32 %v56, 16777215
    %v185 = vand.u32 %v57, 16777215
    %v186 = vand.u32 %v58, 16777215
    %v187 = vand.u32 %v59, 16777215
    %v188 = vand.u32 %v60, 16777215
    %v189 = vand.u32 %v61, 16777215
    %v190 = vand.u32 %v62, 16777215
    %v191 = vand.u32 %v63, 16777215
    %v192 = vand.u32 %v64, 16777215
    %v193 = vand.u32 %v65, 16777215
    %v194 = vand.u32 %v66, 16777215
    %v195 = vand.u32 %v67, 16777215
    %v196 = vand.u32 %v68, 16777215
    %v197 = vand.u32 %v69, 16777215
    %v198 = vand.u32 %v70, 16777215
    %v199 = vand.u32 %v71, 16777215
    %v200 = vand.u32 %v72, 16777215
    %v201 = vand.u32 %v73, 16777215
    %v202 = vand.u32 %v74, 16777215
    %v203 = vand.u32 %v75, 16777215
    %v204 = vand.u32 %v76, 16777215
    %v205 = vand.u32 %v77, 16777215
    %v206 = vand.u32 %v78, 16777215
    %v207 = vand.u32 %v79, 16777215
    %v208 = vand.u32 %v80, 16777215
    %v209 = vand.u32 %v81, 16777215
    %v210 = vand.u32 %v82, 16777215
    %v211 = vand.u32 %v83, 16777215
    %v212 = vand.u32 %v84, 16777215
    %v213 = vand.u32 %v85, 16777215
    %v214 = vand.u32 %v86, 16777215
    %v215 = vand.u32 %v87, 16777215
    %v216 = vand.u32 %v88, 16777215
    %v217 = vand.u32 %v89, 16777215
    %v218 = vand.u32 %v90, 16777215
    %v219 = vand.u32 %v91, 16777215
    %v220 = vand.u32 %v92, 16777215
    %v221 = vand.u32 %v93, 16777215
    %v222 = vand.u32 %v94, 16777215
    %v223 = vand.u32 %v95, 16777215
    %v224 = vand.u32 %v96, 16777215
    %v225 = vand.u32 %v97, 16777215
    %v226 = vand.u32 %v98, 16777215
    %v227 = vand.u32 %v99, 16777215
    %v228 = vand.u32 %v100, 16777215
    %v229 = vand.u32 %v101, 16777215
    %v230 = vand.u32 %v102, 16777215
    %v231 = vand.u32 %v103, 16777215
    %v232 = vand.u32 %v104, 16777215
    %v233 = vand.u32 %v105, 16777215
    %v234 = vand.u32 %v106, 16777215
    %v235 = vand.u32 %v107, 16777215
    %v236 = vand.u32 %v108, 16777215
    %v237 = vand.u32 %v109, 16777215
    %v238 = vand.u32 %v110, 16777215
    %v239 = vand.u32 %v111, 16777215
    %v240 = vand.u32 %v112, 16777215
    %v241 = vand.u32 %v113, 16777215
    %v242 = vand.u32 %v114, 16777215
    %v243 = vand.u32 %v115, 16777215
    %v244 = vand.u32 %v116, 16777215
    %v245 = vand.u32 %v117, 16777215
    %v246 = vand.u32 %v118, 16777215
    %v247 = vand.u32 %v119, 16777215
    %v248 = vand.u32 %v120, 16777215
    %v249 = vand.u32 %v121, 16777215
    %v250 = vand.u32 %v122, 16777215
    %v251 = vand.u32 %v123, 16777215
    %v252 = vand.u32 %v124, 16777215
    %v253 = vand.u32 %v125, 16777215
    %v254 = vand.u32 %v126, 16777215
    %v255 = vand.u32 %v127, 16777215
    %v256 = vand.u32 %v128, 16777215
    %v257 = vand.u32 %v129, 16777215
    %v258 = vand.u32 %v130, 16777215
    %v259 = vand.u32 %v131, 16777215
    %v260 = vand.u32 %v132, 16777215
    %v261 = vand.u32 %v133, 16777215
    %v262 = vand.u32 %v134, 16777215
    %v263 = vand.u32 %v135, 16777215
    %v264 = vand.u32 %v136, 16777215
    %v265 = vand.u32 %v137, 16777215
    %v266 = vand.u32 %v138, 16777215
    %v267 = vand.u32 %v139, 16777215
    %v268 = vand.u32 %v140, 16777215
    %v269 = vand.u32 %v141, 16777215
    %v270 = vand.u32 %v142, 16777215
    %v271 = vand.u32 %v143, 16777215
    %v272 = vand.u32 %v144, 16777215
    %v273 = vand.u32 %v145, 16777215
    %v274 = vand.u32 %v146, 16777215
    %v275 = vand.u32 %v147, 16777215
    %v276 = vand.u32 %v148, 16777215
    %v277 = vand.u32 %v149, 16777215
    %v278 = vand.u32 %v150, 16777215
    %v279 = vand.u32 %v151, 16777215
    %v280 = vand.u32 %v152, 16777215
    %v281 = vand.u32 %v153, 16777215
    %v282 = vand.u32 %v154, 16777215
    %v283 = vand.u32 %v155, 16777215
    %v284 = vand.u32 %v156, 16777215
    %v285 = vand.u32 %v157, 16777215
    %v286 = vand.u32 %v158, 16777215
    %v287 = vand.u32 %v159, 16777215
    %v288 = vand.u32 %v160, 16777215
    %v289 = vand.u32 %v161, 16777215
    %v290 = vand.u32 %v162, 16777215
    %v291 = vand.u32 %v163, 16777215
    %v292 = vand.u32 %v164, 16777215
    %v293 = vand.u32 %v165, 16777215
    %v294 = vand.u32 %v166, 16777215
    %v295 = vand.u32 %v167, 16777215
    %v296 = vand.u32 %v168, 16777215
    %v297 = vand.u32 %v169, 16777215
    %v298 = vand.u32 %v170, 16777215
    %v299 = vand.u32 %v171, 16777215
    %v300 = vand.u32 %v172, 16777215
    %v301 = vand.u32 %v173, 16777215
    %v302 = vand.u32 %v174, 16777215
    %v303 = vand.u32 %v175, 16777215
    %v304 = vand.u32 %v176, 16777215
    %v305 = vand.u32 %v177, 16777215
    %v306 = vand.u32 %v178, 16777215
    %v307 = vand.u32 %v179, 16777215
    %v308 = vand.u32 %v180, 16777215
    %v309 = vand.u32 %v181, 16777215
    %v310 = vand.u32 %v182, 16777215
    %v311 = vand.u32 %v183, 16777215
    %vm312 = vcmp.lt.u32.totalorder %v184, 2516582
    %vm313 = vcmp.lt.u32.totalorder %v185, 2516582
    %vm314 = vcmp.lt.u32.totalorder %v186, 2516582
    %vm315 = vcmp.lt.u32.totalorder %v187, 2516582
    %vm316 = vcmp.lt.u32.totalorder %v188, 2516582
    %vm317 = vcmp.lt.u32.totalorder %v189, 2516582
    %vm318 = vcmp.lt.u32.totalorder %v190, 2516582
    %vm319 = vcmp.lt.u32.totalorder %v191, 2516582
    %vm320 = vcmp.lt.u32.totalorder %v192, 2516582
    %vm321 = vcmp.lt.u32.totalorder %v193, 2516582
    %vm322 = vcmp.lt.u32.totalorder %v194, 2516582
    %vm323 = vcmp.lt.u32.totalorder %v195, 2516582
    %vm324 = vcmp.lt.u32.totalorder %v196, 2516582
    %vm325 = vcmp.lt.u32.totalorder %v197, 2516582
    %vm326 = vcmp.lt.u32.totalorder %v198, 2516582
    %vm327 = vcmp.lt.u32.totalorder %v199, 2516582
    %vm328 = vcmp.lt.u32.totalorder %v200, 2516582
    %vm329 = vcmp.lt.u32.totalorder %v201, 2516582
    %vm330 = vcmp.lt.u32.totalorder %v202, 2516582
    %vm331 = vcmp.lt.u32.totalorder %v203, 2516582
    %vm332 = vcmp.lt.u32.totalorder %v204, 2516582
    %vm333 = vcmp.lt.u32.totalorder %v205, 2516582
    %vm334 = vcmp.lt.u32.totalorder %v206, 2516582
    %vm335 = vcmp.lt.u32.totalorder %v207, 2516582
    %vm336 = vcmp.lt.u32.totalorder %v208, 2516582
    %vm337 = vcmp.lt.u32.totalorder %v209, 2516582
    %vm338 = vcmp.lt.u32.totalorder %v210, 2516582
    %vm339 = vcmp.lt.u32.totalorder %v211, 2516582
    %vm340 = vcmp.lt.u32.totalorder %v212, 2516582
    %vm341 = vcmp.lt.u32.totalorder %v213, 2516582
    %vm342 = vcmp.lt.u32.totalorder %v214, 2516582
    %vm343 = vcmp.lt.u32.totalorder %v215, 2516582
    %vm344 = vcmp.lt.u32.totalorder %v216, 2516582
    %vm345 = vcmp.lt.u32.totalorder %v217, 2516582
    %vm346 = vcmp.lt.u32.totalorder %v218, 2516582
    %vm347 = vcmp.lt.u32.totalorder %v219, 2516582
    %vm348 = vcmp.lt.u32.totalorder %v220, 2516582
    %vm349 = vcmp.lt.u32.totalorder %v221, 2516582
    %vm350 = vcmp.lt.u32.totalorder %v222, 2516582
    %vm351 = vcmp.lt.u32.totalorder %v223, 2516582
    %vm352 = vcmp.lt.u32.totalorder %v224, 2516582
    %vm353 = vcmp.lt.u32.totalorder %v225, 2516582
    %vm354 = vcmp.lt.u32.totalorder %v226, 2516582
    %vm355 = vcmp.lt.u32.totalorder %v227, 2516582
    %vm356 = vcmp.lt.u32.totalorder %v228, 2516582
    %vm357 = vcmp.lt.u32.totalorder %v229, 2516582
    %vm358 = vcmp.lt.u32.totalorder %v230, 2516582
    %vm359 = vcmp.lt.u32.totalorder %v231, 2516582
    %vm360 = vcmp.lt.u32.totalorder %v232, 2516582
    %vm361 = vcmp.lt.u32.totalorder %v233, 2516582
    %vm362 = vcmp.lt.u32.totalorder %v234, 2516582
    %vm363 = vcmp.lt.u32.totalorder %v235, 2516582
    %vm364 = vcmp.lt.u32.totalorder %v236, 2516582
    %vm365 = vcmp.lt.u32.totalorder %v237, 2516582
    %vm366 = vcmp.lt.u32.totalorder %v238, 2516582
    %vm367 = vcmp.lt.u32.totalorder %v239, 2516582
    %vm368 = vcmp.lt.u32.totalorder %v240, 2516582
    %vm369 = vcmp.lt.u32.totalorder %v241, 2516582
    %vm370 = vcmp.lt.u32.totalorder %v242, 2516582
    %vm371 = vcmp.lt.u32.totalorder %v243, 2516582
    %vm372 = vcmp.lt.u32.totalorder %v244, 2516582
    %vm373 = vcmp.lt.u32.totalorder %v245, 2516582
    %vm374 = vcmp.lt.u32.totalorder %v246, 2516582
    %vm375 = vcmp.lt.u32.totalorder %v247, 2516582
    %vm376 = vcmp.lt.u32.totalorder %v248, 2516582
    %vm377 = vcmp.lt.u32.totalorder %v249, 2516582
    %vm378 = vcmp.lt.u32.totalorder %v250, 2516582
    %vm379 = vcmp.lt.u32.totalorder %v251, 2516582
    %vm380 = vcmp.lt.u32.totalorder %v252, 2516582
    %vm381 = vcmp.lt.u32.totalorder %v253, 2516582
    %vm382 = vcmp.lt.u32.totalorder %v254, 2516582
    %vm383 = vcmp.lt.u32.totalorder %v255, 2516582
    %vm384 = vcmp.lt.u32.totalorder %v256, 2516582
    %vm385 = vcmp.lt.u32.totalorder %v257, 2516582
    %vm386 = vcmp.lt.u32.totalorder %v258, 2516582
    %vm387 = vcmp.lt.u32.totalorder %v259, 2516582
    %vm388 = vcmp.lt.u32.totalorder %v260, 2516582
    %vm389 = vcmp.lt.u32.totalorder %v261, 2516582
    %vm390 = vcmp.lt.u32.totalorder %v262, 2516582
    %vm391 = vcmp.lt.u32.totalorder %v263, 2516582
    %vm392 = vcmp.lt.u32.totalorder %v264, 2516582
    %vm393 = vcmp.lt.u32.totalorder %v265, 2516582
    %vm394 = vcmp.lt.u32.totalorder %v266, 2516582
    %vm395 = vcmp.lt.u32.totalorder %v267, 2516582
    %vm396 = vcmp.lt.u32.totalorder %v268, 2516582
    %vm397 = vcmp.lt.u32.totalorder %v269, 2516582
    %vm398 = vcmp.lt.u32.totalorder %v270, 2516582
    %vm399 = vcmp.lt.u32.totalorder %v271, 2516582
    %vm400 = vcmp.lt.u32.totalorder %v272, 2516582
    %vm401 = vcmp.lt.u32.totalorder %v273, 2516582
    %vm402 = vcmp.lt.u32.totalorder %v274, 2516582
    %vm403 = vcmp.lt.u32.totalorder %v275, 2516582
    %vm404 = vcmp.lt.u32.totalorder %v276, 2516582
    %vm405 = vcmp.lt.u32.totalorder %v277, 2516582
    %vm406 = vcmp.lt.u32.totalorder %v278, 2516582
    %vm407 = vcmp.lt.u32.totalorder %v279, 2516582
    %vm408 = vcmp.lt.u32.totalorder %v280, 2516582
    %vm409 = vcmp.lt.u32.totalorder %v281, 2516582
    %vm410 = vcmp.lt.u32.totalorder %v282, 2516582
    %vm411 = vcmp.lt.u32.totalorder %v283, 2516582
    %vm412 = vcmp.lt.u32.totalorder %v284, 2516582
    %vm413 = vcmp.lt.u32.totalorder %v285, 2516582
    %vm414 = vcmp.lt.u32.totalorder %v286, 2516582
    %vm415 = vcmp.lt.u32.totalorder %v287, 2516582
    %vm416 = vcmp.lt.u32.totalorder %v288, 2516582
    %vm417 = vcmp.lt.u32.totalorder %v289, 2516582
    %vm418 = vcmp.lt.u32.totalorder %v290, 2516582
    %vm419 = vcmp.lt.u32.totalorder %v291, 2516582
    %vm420 = vcmp.lt.u32.totalorder %v292, 2516582
    %vm421 = vcmp.lt.u32.totalorder %v293, 2516582
    %vm422 = vcmp.lt.u32.totalorder %v294, 2516582
    %vm423 = vcmp.lt.u32.totalorder %v295, 2516582
    %vm424 = vcmp.lt.u32.totalorder %v296, 2516582
    %vm425 = vcmp.lt.u32.totalorder %v297, 2516582
    %vm426 = vcmp.lt.u32.totalorder %v298, 2516582
    %vm427 = vcmp.lt.u32.totalorder %v299, 2516582
    %vm428 = vcmp.lt.u32.totalorder %v300, 2516582
    %vm429 = vcmp.lt.u32.totalorder %v301, 2516582
    %vm430 = vcmp.lt.u32.totalorder %v302, 2516582
    %vm431 = vcmp.lt.u32.totalorder %v303, 2516582
    %vm432 = vcmp.lt.u32.totalorder %v304, 2516582
    %vm433 = vcmp.lt.u32.totalorder %v305, 2516582
    %vm434 = vcmp.lt.u32.totalorder %v306, 2516582
    %vm435 = vcmp.lt.u32.totalorder %v307, 2516582
    %vm436 = vcmp.lt.u32.totalorder %v308, 2516582
    %vm437 = vcmp.lt.u32.totalorder %v309, 2516582
    %vm438 = vcmp.lt.u32.totalorder %v310, 2516582
    %vm439 = vcmp.lt.u32.totalorder %v311, 2516582
    %v440 = vld [vmem:[#allocation5] sm:$0xff]
    %v441 = vld [vmem:[#allocation5 + $0x8] sm:$0xff]
    %v442 = vld [vmem:[#allocation5 + $0x10] sm:$0xff]
    %v443 = vld [vmem:[#allocation5 + $0x18] sm:$0xff]
    %v444 = vld [vmem:[#allocation5 + $0x20] sm:$0xff]
    %v445 = vld [vmem:[#allocation5 + $0x28] sm:$0xff]
    %v446 = vld [vmem:[#allocation5 + $0x30] sm:$0xff]
    %v447 = vld [vmem:[#allocation5 + $0x38] sm:$0xff]
    %v448 = vld [vmem:[#allocation5 + $0x40] sm:$0xff]
    %v449 = vld [vmem:[#allocation5 + $0x48] sm:$0xff]
    %v450 = vld [vmem:[#allocation5 + $0x50] sm:$0xff]
    %v451 = vld [vmem:[#allocation5 + $0x58] sm:$0xff]
    %v452 = vld [vmem:[#allocation5 + $0x60] sm:$0xff]
    %v453 = vld [vmem:[#allocation5 + $0x68] sm:$0xff]
    %v454 = vld [vmem:[#allocation5 + $0x70] sm:$0xff]
    %v455 = vld [vmem:[#allocation5 + $0x78] sm:$0xff]
    %v456 = vld [vmem:[#allocation5 + $0x80] sm:$0xff]
    %v457 = vld [vmem:[#allocation5 + $0x88] sm:$0xff]
    %v458 = vld [vmem:[#allocation5 + $0x90] sm:$0xff]
    %v459 = vld [vmem:[#allocation5 + $0x98] sm:$0xff]
    %v460 = vld [vmem:[#allocation5 + $0xa0] sm:$0xff]
    %v461 = vld [vmem:[#allocation5 + $0xa8] sm:$0xff]
    %v462 = vld [vmem:[#allocation5 + $0xb0] sm:$0xff]
    %v463 = vld [vmem:[#allocation5 + $0xb8] sm:$0xff]
    %v464 = vld [vmem:[#allocation5 + $0xc0] sm:$0xff]
    %v465 = vld [vmem:[#allocation5 + $0xc8] sm:$0xff]
    %v466 = vld [vmem:[#allocation5 + $0xd0] sm:$0xff]
    %v467 = vld [vmem:[#allocation5 + $0xd8] sm:$0xff]
    %v468 = vld [vmem:[#allocation5 + $0xe0] sm:$0xff]
    %v469 = vld [vmem:[#allocation5 + $0xe8] sm:$0xff]
    %v470 = vld [vmem:[#allocation5 + $0xf0] sm:$0xff]
    %v471 = vld [vmem:[#allocation5 + $0xf8] sm:$0xff]
    %v472 = vld [vmem:[#allocation5 + $0x100] sm:$0xff]
    %v473 = vld [vmem:[#allocation5 + $0x108] sm:$0xff]
    %v474 = vld [vmem:[#allocation5 + $0x110] sm:$0xff]
    %v475 = vld [vmem:[#allocation5 + $0x118] sm:$0xff]
    %v476 = vld [vmem:[#allocation5 + $0x120] sm:$0xff]
    %v477 = vld [vmem:[#allocation5 + $0x128] sm:$0xff]
    %v478 = vld [vmem:[#allocation5 + $0x130] sm:$0xff]
    %v479 = vld [vmem:[#allocation5 + $0x138] sm:$0xff]
    %v480 = vld [vmem:[#allocation5 + $0x140] sm:$0xff]
    %v481 = vld [vmem:[#allocation5 + $0x148] sm:$0xff]
    %v482 = vld [vmem:[#allocation5 + $0x150] sm:$0xff]
    %v483 = vld [vmem:[#allocation5 + $0x158] sm:$0xff]
    %v484 = vld [vmem:[#allocation5 + $0x160] sm:$0xff]
    %v485 = vld [vmem:[#allocation5 + $0x168] sm:$0xff]
    %v486 = vld [vmem:[#allocation5 + $0x170] sm:$0xff]
    %v487 = vld [vmem:[#allocation5 + $0x178] sm:$0xff]
    %v488 = vld [vmem:[#allocation5 + $0x180] sm:$0xff]
    %v489 = vld [vmem:[#allocation5 + $0x188] sm:$0xff]
    %v490 = vld [vmem:[#allocation5 + $0x190] sm:$0xff]
    %v491 = vld [vmem:[#allocation5 + $0x198] sm:$0xff]
    %v492 = vld [vmem:[#allocation5 + $0x1a0] sm:$0xff]
    %v493 = vld [vmem:[#allocation5 + $0x1a8] sm:$0xff]
    %v494 = vld [vmem:[#allocation5 + $0x1b0] sm:$0xff]
    %v495 = vld [vmem:[#allocation5 + $0x1b8] sm:$0xff]
    %v496 = vld [vmem:[#allocation5 + $0x1c0] sm:$0xff]
    %v497 = vld [vmem:[#allocation5 + $0x1c8] sm:$0xff]
    %v498 = vld [vmem:[#allocation5 + $0x1d0] sm:$0xff]
    %v499 = vld [vmem:[#allocation5 + $0x1d8] sm:$0xff]
    %v500 = vld [vmem:[#allocation5 + $0x1e0] sm:$0xff]
    %v501 = vld [vmem:[#allocation5 + $0x1e8] sm:$0xff]
    %v502 = vld [vmem:[#allocation5 + $0x1f0] sm:$0xff]
    %v503 = vld [vmem:[#allocation5 + $0x1f8] sm:$0xff]
    %v504 = vld [vmem:[#allocation5 + $0x200] sm:$0xff]
    %v505 = vld [vmem:[#allocation5 + $0x208] sm:$0xff]
    %v506 = vld [vmem:[#allocation5 + $0x210] sm:$0xff]
    %v507 = vld [vmem:[#allocation5 + $0x218] sm:$0xff]
    %v508 = vld [vmem:[#allocation5 + $0x220] sm:$0xff]
    %v509 = vld [vmem:[#allocation5 + $0x228] sm:$0xff]
    %v510 = vld [vmem:[#allocation5 + $0x230] sm:$0xff]
    %v511 = vld [vmem:[#allocation5 + $0x238] sm:$0xff]
    %v512 = vld [vmem:[#allocation5 + $0x240] sm:$0xff]
    %v513 = vld [vmem:[#allocation5 + $0x248] sm:$0xff]
    %v514 = vld [vmem:[#allocation5 + $0x250] sm:$0xff]
    %v515 = vld [vmem:[#allocation5 + $0x258] sm:$0xff]
    %v516 = vld [vmem:[#allocation5 + $0x260] sm:$0xff]
    %v517 = vld [vmem:[#allocation5 + $0x268] sm:$0xff]
    %v518 = vld [vmem:[#allocation5 + $0x270] sm:$0xff]
    %v519 = vld [vmem:[#allocation5 + $0x278] sm:$0xff]
    %v520 = vld [vmem:[#allocation5 + $0x280] sm:$0xff]
    %v521 = vld [vmem:[#allocation5 + $0x288] sm:$0xff]
    %v522 = vld [vmem:[#allocation5 + $0x290] sm:$0xff]
    %v523 = vld [vmem:[#allocation5 + $0x298] sm:$0xff]
    %v524 = vld [vmem:[#allocation5 + $0x2a0] sm:$0xff]
    %v525 = vld [vmem:[#allocation5 + $0x2a8] sm:$0xff]
    %v526 = vld [vmem:[#allocation5 + $0x2b0] sm:$0xff]
    %v527 = vld [vmem:[#allocation5 + $0x2b8] sm:$0xff]
    %v528 = vld [vmem:[#allocation5 + $0x2c0] sm:$0xff]
    %v529 = vld [vmem:[#allocation5 + $0x2c8] sm:$0xff]
    %v530 = vld [vmem:[#allocation5 + $0x2d0] sm:$0xff]
    %v531 = vld [vmem:[#allocation5 + $0x2d8] sm:$0xff]
    %v532 = vld [vmem:[#allocation5 + $0x2e0] sm:$0xff]
    %v533 = vld [vmem:[#allocation5 + $0x2e8] sm:$0xff]
    %v534 = vld [vmem:[#allocation5 + $0x2f0] sm:$0xff]
    %v535 = vld [vmem:[#allocation5 + $0x2f8] sm:$0xff]
    %v536 = vld [vmem:[#allocation5 + $0x300] sm:$0xff]
    %v537 = vld [vmem:[#allocation5 + $0x308] sm:$0xff]
    %v538 = vld [vmem:[#allocation5 + $0x310] sm:$0xff]
    %v539 = vld [vmem:[#allocation5 + $0x318] sm:$0xff]
    %v540 = vld [vmem:[#allocation5 + $0x320] sm:$0xff]
    %v541 = vld [vmem:[#allocation5 + $0x328] sm:$0xff]
    %v542 = vld [vmem:[#allocation5 + $0x330] sm:$0xff]
    %v543 = vld [vmem:[#allocation5 + $0x338] sm:$0xff]
    %v544 = vld [vmem:[#allocation5 + $0x340] sm:$0xff]
    %v545 = vld [vmem:[#allocation5 + $0x348] sm:$0xff]
    %v546 = vld [vmem:[#allocation5 + $0x350] sm:$0xff]
    %v547 = vld [vmem:[#allocation5 + $0x358] sm:$0xff]
    %v548 = vld [vmem:[#allocation5 + $0x360] sm:$0xff]
    %v549 = vld [vmem:[#allocation5 + $0x368] sm:$0xff]
    %v550 = vld [vmem:[#allocation5 + $0x370] sm:$0xff]
    %v551 = vld [vmem:[#allocation5 + $0x378] sm:$0xff]
    %v552 = vld [vmem:[#allocation5 + $0x380] sm:$0xff]
    %v553 = vld [vmem:[#allocation5 + $0x388] sm:$0xff]
    %v554 = vld [vmem:[#allocation5 + $0x390] sm:$0xff]
    %v555 = vld [vmem:[#allocation5 + $0x398] sm:$0xff]
    %v556 = vld [vmem:[#allocation5 + $0x3a0] sm:$0xff]
    %v557 = vld [vmem:[#allocation5 + $0x3a8] sm:$0xff]
    %v558 = vld [vmem:[#allocation5 + $0x3b0] sm:$0xff]
    %v559 = vld [vmem:[#allocation5 + $0x3b8] sm:$0xff]
    %v560 = vld [vmem:[#allocation5 + $0x3c0] sm:$0xff]
    %v561 = vld [vmem:[#allocation5 + $0x3c8] sm:$0xff]
    %v562 = vld [vmem:[#allocation5 + $0x3d0] sm:$0xff]
    %v563 = vld [vmem:[#allocation5 + $0x3d8] sm:$0xff]
    %v564 = vld [vmem:[#allocation5 + $0x3e0] sm:$0xff]
    %v565 = vld [vmem:[#allocation5 + $0x3e8] sm:$0xff]
    %v566 = vld [vmem:[#allocation5 + $0x3f0] sm:$0xff]
    %v567 = vld [vmem:[#allocation5 + $0x3f8] sm:$0xff]
    %v568 = vld [vmem:[#allocation2] sm:$0xff]
    %v569 = vld [vmem:[#allocation2 + $0x8] sm:$0xff]
    %v570 = vld [vmem:[#allocation2 + $0x10] sm:$0xff]
    %v571 = vld [vmem:[#allocation2 + $0x18] sm:$0xff]
    %v572 = vld [vmem:[#allocation2 + $0x20] sm:$0xff]
    %v573 = vld [vmem:[#allocation2 + $0x28] sm:$0xff]
    %v574 = vld [vmem:[#allocation2 + $0x30] sm:$0xff]
    %v575 = vld [vmem:[#allocation2 + $0x38] sm:$0xff]
    %v576 = vld [vmem:[#allocation2 + $0x40] sm:$0xff]
    %v577 = vld [vmem:[#allocation2 + $0x48] sm:$0xff]
    %v578 = vld [vmem:[#allocation2 + $0x50] sm:$0xff]
    %v579 = vld [vmem:[#allocation2 + $0x58] sm:$0xff]
    %v580 = vld [vmem:[#allocation2 + $0x60] sm:$0xff]
    %v581 = vld [vmem:[#allocation2 + $0x68] sm:$0xff]
    %v582 = vld [vmem:[#allocation2 + $0x70] sm:$0xff]
    %v583 = vld [vmem:[#allocation2 + $0x78] sm:$0xff]
    %v584 = vld [vmem:[#allocation2 + $0x80] sm:$0xff]
    %v585 = vld [vmem:[#allocation2 + $0x88] sm:$0xff]
    %v586 = vld [vmem:[#allocation2 + $0x90] sm:$0xff]
    %v587 = vld [vmem:[#allocation2 + $0x98] sm:$0xff]
    %v588 = vld [vmem:[#allocation2 + $0xa0] sm:$0xff]
    %v589 = vld [vmem:[#allocation2 + $0xa8] sm:$0xff]
    %v590 = vld [vmem:[#allocation2 + $0xb0] sm:$0xff]
    %v591 = vld [vmem:[#allocation2 + $0xb8] sm:$0xff]
    %v592 = vld [vmem:[#allocation2 + $0xc0] sm:$0xff]
    %v593 = vld [vmem:[#allocation2 + $0xc8] sm:$0xff]
    %v594 = vld [vmem:[#allocation2 + $0xd0] sm:$0xff]
    %v595 = vld [vmem:[#allocation2 + $0xd8] sm:$0xff]
    %v596 = vld [vmem:[#allocation2 + $0xe0] sm:$0xff]
    %v597 = vld [vmem:[#allocation2 + $0xe8] sm:$0xff]
    %v598 = vld [vmem:[#allocation2 + $0xf0] sm:$0xff]
    %v599 = vld [vmem:[#allocation2 + $0xf8] sm:$0xff]
    %v600 = vld [vmem:[#allocation2 + $0x100] sm:$0xff]
    %v601 = vld [vmem:[#allocation2 + $0x108] sm:$0xff]
    %v602 = vld [vmem:[#allocation2 + $0x110] sm:$0xff]
    %v603 = vld [vmem:[#allocation2 + $0x118] sm:$0xff]
    %v604 = vld [vmem:[#allocation2 + $0x120] sm:$0xff]
    %v605 = vld [vmem:[#allocation2 + $0x128] sm:$0xff]
    %v606 = vld [vmem:[#allocation2 + $0x130] sm:$0xff]
    %v607 = vld [vmem:[#allocation2 + $0x138] sm:$0xff]
    %v608 = vld [vmem:[#allocation2 + $0x140] sm:$0xff]
    %v609 = vld [vmem:[#allocation2 + $0x148] sm:$0xff]
    %v610 = vld [vmem:[#allocation2 + $0x150] sm:$0xff]
    %v611 = vld [vmem:[#allocation2 + $0x158] sm:$0xff]
    %v612 = vld [vmem:[#allocation2 + $0x160] sm:$0xff]
    %v613 = vld [vmem:[#allocation2 + $0x168] sm:$0xff]
    %v614 = vld [vmem:[#allocation2 + $0x170] sm:$0xff]
    %v615 = vld [vmem:[#allocation2 + $0x178] sm:$0xff]
    %v616 = vld [vmem:[#allocation2 + $0x180] sm:$0xff]
    %v617 = vld [vmem:[#allocation2 + $0x188] sm:$0xff]
    %v618 = vld [vmem:[#allocation2 + $0x190] sm:$0xff]
    %v619 = vld [vmem:[#allocation2 + $0x198] sm:$0xff]
    %v620 = vld [vmem:[#allocation2 + $0x1a0] sm:$0xff]
    %v621 = vld [vmem:[#allocation2 + $0x1a8] sm:$0xff]
    %v622 = vld [vmem:[#allocation2 + $0x1b0] sm:$0xff]
    %v623 = vld [vmem:[#allocation2 + $0x1b8] sm:$0xff]
    %v624 = vld [vmem:[#allocation2 + $0x1c0] sm:$0xff]
    %v625 = vld [vmem:[#allocation2 + $0x1c8] sm:$0xff]
    %v626 = vld [vmem:[#allocation2 + $0x1d0] sm:$0xff]
    %v627 = vld [vmem:[#allocation2 + $0x1d8] sm:$0xff]
    %v628 = vld [vmem:[#allocation2 + $0x1e0] sm:$0xff]
    %v629 = vld [vmem:[#allocation2 + $0x1e8] sm:$0xff]
    %v630 = vld [vmem:[#allocation2 + $0x1f0] sm:$0xff]
    %v631 = vld [vmem:[#allocation2 + $0x1f8] sm:$0xff]
    %v632 = vld [vmem:[#allocation2 + $0x200] sm:$0xff]
    %v633 = vld [vmem:[#allocation2 + $0x208] sm:$0xff]
    %v634 = vld [vmem:[#allocation2 + $0x210] sm:$0xff]
    %v635 = vld [vmem:[#allocation2 + $0x218] sm:$0xff]
    %v636 = vld [vmem:[#allocation2 + $0x220] sm:$0xff]
    %v637 = vld [vmem:[#allocation2 + $0x228] sm:$0xff]
    %v638 = vld [vmem:[#allocation2 + $0x230] sm:$0xff]
    %v639 = vld [vmem:[#allocation2 + $0x238] sm:$0xff]
    %v640 = vld [vmem:[#allocation2 + $0x240] sm:$0xff]
    %v641 = vld [vmem:[#allocation2 + $0x248] sm:$0xff]
    %v642 = vld [vmem:[#allocation2 + $0x250] sm:$0xff]
    %v643 = vld [vmem:[#allocation2 + $0x258] sm:$0xff]
    %v644 = vld [vmem:[#allocation2 + $0x260] sm:$0xff]
    %v645 = vld [vmem:[#allocation2 + $0x268] sm:$0xff]
    %v646 = vld [vmem:[#allocation2 + $0x270] sm:$0xff]
    %v647 = vld [vmem:[#allocation2 + $0x278] sm:$0xff]
    %v648 = vld [vmem:[#allocation2 + $0x280] sm:$0xff]
    %v649 = vld [vmem:[#allocation2 + $0x288] sm:$0xff]
    %v650 = vld [vmem:[#allocation2 + $0x290] sm:$0xff]
    %v651 = vld [vmem:[#allocation2 + $0x298] sm:$0xff]
    %v652 = vld [vmem:[#allocation2 + $0x2a0] sm:$0xff]
    %v653 = vld [vmem:[#allocation2 + $0x2a8] sm:$0xff]
    %v654 = vld [vmem:[#allocation2 + $0x2b0] sm:$0xff]
    %v655 = vld [vmem:[#allocation2 + $0x2b8] sm:$0xff]
    %v656 = vld [vmem:[#allocation2 + $0x2c0] sm:$0xff]
    %v657 = vld [vmem:[#allocation2 + $0x2c8] sm:$0xff]
    %v658 = vld [vmem:[#allocation2 + $0x2d0] sm:$0xff]
    %v659 = vld [vmem:[#allocation2 + $0x2d8] sm:$0xff]
    %v660 = vld [vmem:[#allocation2 + $0x2e0] sm:$0xff]
    %v661 = vld [vmem:[#allocation2 + $0x2e8] sm:$0xff]
    %v662 = vld [vmem:[#allocation2 + $0x2f0] sm:$0xff]
    %v663 = vld [vmem:[#allocation2 + $0x2f8] sm:$0xff]
    %v664 = vld [vmem:[#allocation2 + $0x300] sm:$0xff]
    %v665 = vld [vmem:[#allocation2 + $0x308] sm:$0xff]
    %v666 = vld [vmem:[#allocation2 + $0x310] sm:$0xff]
    %v667 = vld [vmem:[#allocation2 + $0x318] sm:$0xff]
    %v668 = vld [vmem:[#allocation2 + $0x320] sm:$0xff]
    %v669 = vld [vmem:[#allocation2 + $0x328] sm:$0xff]
    %v670 = vld [vmem:[#allocation2 + $0x330] sm:$0xff]
    %v671 = vld [vmem:[#allocation2 + $0x338] sm:$0xff]
    %v672 = vld [vmem:[#allocation2 + $0x340] sm:$0xff]
    %v673 = vld [vmem:[#allocation2 + $0x348] sm:$0xff]
    %v674 = vld [vmem:[#allocation2 + $0x350] sm:$0xff]
    %v675 = vld [vmem:[#allocation2 + $0x358] sm:$0xff]
    %v676 = vld [vmem:[#allocation2 + $0x360] sm:$0xff]
    %v677 = vld [vmem:[#allocation2 + $0x368] sm:$0xff]
    %v678 = vld [vmem:[#allocation2 + $0x370] sm:$0xff]
    %v679 = vld [vmem:[#allocation2 + $0x378] sm:$0xff]
    %v680 = vld [vmem:[#allocation2 + $0x380] sm:$0xff]
    %v681 = vld [vmem:[#allocation2 + $0x388] sm:$0xff]
    %v682 = vld [vmem:[#allocation2 + $0x390] sm:$0xff]
    %v683 = vld [vmem:[#allocation2 + $0x398] sm:$0xff]
    %v684 = vld [vmem:[#allocation2 + $0x3a0] sm:$0xff]
    %v685 = vld [vmem:[#allocation2 + $0x3a8] sm:$0xff]
    %v686 = vld [vmem:[#allocation2 + $0x3b0] sm:$0xff]
    %v687 = vld [vmem:[#allocation2 + $0x3b8] sm:$0xff]
    %v688 = vld [vmem:[#allocation2 + $0x3c0] sm:$0xff]
    %v689 = vld [vmem:[#allocation2 + $0x3c8] sm:$0xff]
    %v690 = vld [vmem:[#allocation2 + $0x3d0] sm:$0xff]
    %v691 = vld [vmem:[#allocation2 + $0x3d8] sm:$0xff]
    %v692 = vld [vmem:[#allocation2 + $0x3e0] sm:$0xff]
    %v693 = vld [vmem:[#allocation2 + $0x3e8] sm:$0xff]
    %v694 = vld [vmem:[#allocation2 + $0x3f0] sm:$0xff]
    %v695 = vld [vmem:[#allocation2 + $0x3f8] sm:$0xff]
    %v696 = vsel %vm312, %v440, %v568
    %v697 = vsel %vm313, %v441, %v569
    %v698 = vsel %vm314, %v442, %v570
    %v699 = vsel %vm315, %v443, %v571
    %v700 = vsel %vm316, %v444, %v572
    %v701 = vsel %vm317, %v445, %v573
    %v702 = vsel %vm318, %v446, %v574
    %v703 = vsel %vm319, %v447, %v575
    %v704 = vsel %vm320, %v448, %v576
    %v705 = vsel %vm321, %v449, %v577
    %v706 = vsel %vm322, %v450, %v578
    %v707 = vsel %vm323, %v451, %v579
    %v708 = vsel %vm324, %v452, %v580
    %v709 = vsel %vm325, %v453, %v581
    %v710 = vsel %vm326, %v454, %v582
    %v711 = vsel %vm327, %v455, %v583
    %v712 = vsel %vm328, %v456, %v584
    %v713 = vsel %vm329, %v457, %v585
    %v714 = vsel %vm330, %v458, %v586
    %v715 = vsel %vm331, %v459, %v587
    %v716 = vsel %vm332, %v460, %v588
    %v717 = vsel %vm333, %v461, %v589
    %v718 = vsel %vm334, %v462, %v590
    %v719 = vsel %vm335, %v463, %v591
    %v720 = vsel %vm336, %v464, %v592
    %v721 = vsel %vm337, %v465, %v593
    %v722 = vsel %vm338, %v466, %v594
    %v723 = vsel %vm339, %v467, %v595
    %v724 = vsel %vm340, %v468, %v596
    %v725 = vsel %vm341, %v469, %v597
    %v726 = vsel %vm342, %v470, %v598
    %v727 = vsel %vm343, %v471, %v599
    %v728 = vsel %vm344, %v472, %v600
    %v729 = vsel %vm345, %v473, %v601
    %v730 = vsel %vm346, %v474, %v602
    %v731 = vsel %vm347, %v475, %v603
    %v732 = vsel %vm348, %v476, %v604
    %v733 = vsel %vm349, %v477, %v605
    %v734 = vsel %vm350, %v478, %v606
    %v735 = vsel %vm351, %v479, %v607
    %v736 = vsel %vm352, %v480, %v608
    %v737 = vsel %vm353, %v481, %v609
    %v738 = vsel %vm354, %v482, %v610
    %v739 = vsel %vm355, %v483, %v611
    %v740 = vsel %vm356, %v484, %v612
    %v741 = vsel %vm357, %v485, %v613
    %v742 = vsel %vm358, %v486, %v614
    %v743 = vsel %vm359, %v487, %v615
    %v744 = vsel %vm360, %v488, %v616
    %v745 = vsel %vm361, %v489, %v617
    %v746 = vsel %vm362, %v490, %v618
    %v747 = vsel %vm363, %v491, %v619
    %v748 = vsel %vm364, %v492, %v620
    %v749 = vsel %vm365, %v493, %v621
    %v750 = vsel %vm366, %v494, %v622
    %v751 = vsel %vm367, %v495, %v623
    %v752 = vsel %vm368, %v496, %v624
    %v753 = vsel %vm369, %v497, %v625
    %v754 = vsel %vm370, %v498, %v626
    %v755 = vsel %vm371, %v499, %v627
    %v756 = vsel %vm372, %v500, %v628
    %v757 = vsel %vm373, %v501, %v629
    %v758 = vsel %vm374, %v502, %v630
    %v759 = vsel %vm375, %v503, %v631
    %v760 = vsel %vm376, %v504, %v632
    %v761 = vsel %vm377, %v505, %v633
    %v762 = vsel %vm378, %v506, %v634
    %v763 = vsel %vm379, %v507, %v635
    %v764 = vsel %vm380, %v508, %v636
    %v765 = vsel %vm381, %v509, %v637
    %v766 = vsel %vm382, %v510, %v638
    %v767 = vsel %vm383, %v511, %v639
    %v768 = vsel %vm384, %v512, %v640
    %v769 = vsel %vm385, %v513, %v641
    %v770 = vsel %vm386, %v514, %v642
    %v771 = vsel %vm387, %v515, %v643
    %v772 = vsel %vm388, %v516, %v644
    %v773 = vsel %vm389, %v517, %v645
    %v774 = vsel %vm390, %v518, %v646
    %v775 = vsel %vm391, %v519, %v647
    %v776 = vsel %vm392, %v520, %v648
    %v777 = vsel %vm393, %v521, %v649
    %v778 = vsel %vm394, %v522, %v650
    %v779 = vsel %vm395, %v523, %v651
    %v780 = vsel %vm396, %v524, %v652
    %v781 = vsel %vm397, %v525, %v653
    %v782 = vsel %vm398, %v526, %v654
    %v783 = vsel %vm399, %v527, %v655
    %v784 = vsel %vm400, %v528, %v656
    %v785 = vsel %vm401, %v529, %v657
    %v786 = vsel %vm402, %v530, %v658
    %v787 = vsel %vm403, %v531, %v659
    %v788 = vsel %vm404, %v532, %v660
    %v789 = vsel %vm405, %v533, %v661
    %v790 = vsel %vm406, %v534, %v662
    %v791 = vsel %vm407, %v535, %v663
    %v792 = vsel %vm408, %v536, %v664
    %v793 = vsel %vm409, %v537, %v665
    %v794 = vsel %vm410, %v538, %v666
    %v795 = vsel %vm411, %v539, %v667
    %v796 = vsel %vm412, %v540, %v668
    %v797 = vsel %vm413, %v541, %v669
    %v798 = vsel %vm414, %v542, %v670
    %v799 = vsel %vm415, %v543, %v671
    %v800 = vsel %vm416, %v544, %v672
    %v801 = vsel %vm417, %v545, %v673
    %v802 = vsel %vm418, %v546, %v674
    %v803 = vsel %vm419, %v547, %v675
    %v804 = vsel %vm420, %v548, %v676
    %v805 = vsel %vm421, %v549, %v677
    %v806 = vsel %vm422, %v550, %v678
    %v807 = vsel %vm423, %v551, %v679
    %v808 = vsel %vm424, %v552, %v680
    %v809 = vsel %vm425, %v553, %v681
    %v810 = vsel %vm426, %v554, %v682
    %v811 = vsel %vm427, %v555, %v683
    %v812 = vsel %vm428, %v556, %v684
    %v813 = vsel %vm429, %v557, %v685
    %v814 = vsel %vm430, %v558, %v686
    %v815 = vsel %vm431, %v559, %v687
    %v816 = vsel %vm432, %v560, %v688
    %v817 = vsel %vm433, %v561, %v689
    %v818 = vsel %vm434, %v562, %v690
    %v819 = vsel %vm435, %v563, %v691
    %v820 = vsel %vm436, %v564, %v692
    %v821 = vsel %vm437, %v565, %v693
    %v822 = vsel %vm438, %v566, %v694
    %v823 = vsel %vm439, %v567, %v695
    %824 = vst [vmem:[#allocation8] sm:$0xff] %v696
    %825 = vst [vmem:[#allocation8 + $0x8] sm:$0xff] %v697
    %826 = vst [vmem:[#allocation8 + $0x10] sm:$0xff] %v698
    %827 = vst [vmem:[#allocation8 + $0x18] sm:$0xff] %v699
    %828 = vst [vmem:[#allocation8 + $0x20] sm:$0xff] %v700
    %829 = vst [vmem:[#allocation8 + $0x28] sm:$0xff] %v701
    %830 = vst [vmem:[#allocation8 + $0x30] sm:$0xff] %v702
    %831 = vst [vmem:[#allocation8 + $0x38] sm:$0xff] %v703
    %832 = vst [vmem:[#allocation8 + $0x40] sm:$0xff] %v704
    %833 = vst [vmem:[#allocation8 + $0x48] sm:$0xff] %v705
    %834 = vst [vmem:[#allocation8 + $0x50] sm:$0xff] %v706
    %835 = vst [vmem:[#allocation8 + $0x58] sm:$0xff] %v707
    %836 = vst [vmem:[#allocation8 + $0x60] sm:$0xff] %v708
    %837 = vst [vmem:[#allocation8 + $0x68] sm:$0xff] %v709
    %838 = vst [vmem:[#allocation8 + $0x70] sm:$0xff] %v710
    %839 = vst [vmem:[#allocation8 + $0x78] sm:$0xff] %v711
    %840 = vst [vmem:[#allocation8 + $0x80] sm:$0xff] %v712
    %841 = vst [vmem:[#allocation8 + $0x88] sm:$0xff] %v713
    %842 = vst [vmem:[#allocation8 + $0x90] sm:$0xff] %v714
    %843 = vst [vmem:[#allocation8 + $0x98] sm:$0xff] %v715
    %844 = vst [vmem:[#allocation8 + $0xa0] sm:$0xff] %v716
    %845 = vst [vmem:[#allocation8 + $0xa8] sm:$0xff] %v717
    %846 = vst [vmem:[#allocation8 + $0xb0] sm:$0xff] %v718
    %847 = vst [vmem:[#allocation8 + $0xb8] sm:$0xff] %v719
    %848 = vst [vmem:[#allocation8 + $0xc0] sm:$0xff] %v720
    %849 = vst [vmem:[#allocation8 + $0xc8] sm:$0xff] %v721
    %850 = vst [vmem:[#allocation8 + $0xd0] sm:$0xff] %v722
    %851 = vst [vmem:[#allocation8 + $0xd8] sm:$0xff] %v723
    %852 = vst [vmem:[#allocation8 + $0xe0] sm:$0xff] %v724
    %853 = vst [vmem:[#allocation8 + $0xe8] sm:$0xff] %v725
    %854 = vst [vmem:[#allocation8 + $0xf0] sm:$0xff] %v726
    %855 = vst [vmem:[#allocation8 + $0xf8] sm:$0xff] %v727
    %856 = vst [vmem:[#allocation8 + $0x100] sm:$0xff] %v728
    %857 = vst [vmem:[#allocation8 + $0x108] sm:$0xff] %v729
    %858 = vst [vmem:[#allocation8 + $0x110] sm:$0xff] %v730
    %859 = vst [vmem:[#allocation8 + $0x118] sm:$0xff] %v731
    %860 = vst [vmem:[#allocation8 + $0x120] sm:$0xff] %v732
    %861 = vst [vmem:[#allocation8 + $0x128] sm:$0xff] %v733
    %862 = vst [vmem:[#allocation8 + $0x130] sm:$0xff] %v734
    %863 = vst [vmem:[#allocation8 + $0x138] sm:$0xff] %v735
    %864 = vst [vmem:[#allocation8 + $0x140] sm:$0xff] %v736
    %865 = vst [vmem:[#allocation8 + $0x148] sm:$0xff] %v737
    %866 = vst [vmem:[#allocation8 + $0x150] sm:$0xff] %v738
    %867 = vst [vmem:[#allocation8 + $0x158] sm:$0xff] %v739
    %868 = vst [vmem:[#allocation8 + $0x160] sm:$0xff] %v740
    %869 = vst [vmem:[#allocation8 + $0x168] sm:$0xff] %v741
    %870 = vst [vmem:[#allocation8 + $0x170] sm:$0xff] %v742
    %871 = vst [vmem:[#allocation8 + $0x178] sm:$0xff] %v743
    %872 = vst [vmem:[#allocation8 + $0x180] sm:$0xff] %v744
    %873 = vst [vmem:[#allocation8 + $0x188] sm:$0xff] %v745
    %874 = vst [vmem:[#allocation8 + $0x190] sm:$0xff] %v746
    %875 = vst [vmem:[#allocation8 + $0x198] sm:$0xff] %v747
    %876 = vst [vmem:[#allocation8 + $0x1a0] sm:$0xff] %v748
    %877 = vst [vmem:[#allocation8 + $0x1a8] sm:$0xff] %v749
    %878 = vst [vmem:[#allocation8 + $0x1b0] sm:$0xff] %v750
    %879 = vst [vmem:[#allocation8 + $0x1b8] sm:$0xff] %v751
    %880 = vst [vmem:[#allocation8 + $0x1c0] sm:$0xff] %v752
    %881 = vst [vmem:[#allocation8 + $0x1c8] sm:$0xff] %v753
    %882 = vst [vmem:[#allocation8 + $0x1d0] sm:$0xff] %v754
    %883 = vst [vmem:[#allocation8 + $0x1d8] sm:$0xff] %v755
    %884 = vst [vmem:[#allocation8 + $0x1e0] sm:$0xff] %v756
    %885 = vst [vmem:[#allocation8 + $0x1e8] sm:$0xff] %v757
    %886 = vst [vmem:[#allocation8 + $0x1f0] sm:$0xff] %v758
    %887 = vst [vmem:[#allocation8 + $0x1f8] sm:$0xff] %v759
    %888 = vst [vmem:[#allocation8 + $0x200] sm:$0xff] %v760
    %889 = vst [vmem:[#allocation8 + $0x208] sm:$0xff] %v761
    %890 = vst [vmem:[#allocation8 + $0x210] sm:$0xff] %v762
    %891 = vst [vmem:[#allocation8 + $0x218] sm:$0xff] %v763
    %892 = vst [vmem:[#allocation8 + $0x220] sm:$0xff] %v764
    %893 = vst [vmem:[#allocation8 + $0x228] sm:$0xff] %v765
    %894 = vst [vmem:[#allocation8 + $0x230] sm:$0xff] %v766
    %895 = vst [vmem:[#allocation8 + $0x238] sm:$0xff] %v767
    %896 = vst [vmem:[#allocation8 + $0x240] sm:$0xff] %v768
    %897 = vst [vmem:[#allocation8 + $0x248] sm:$0xff] %v769
    %898 = vst [vmem:[#allocation8 + $0x250] sm:$0xff] %v770
    %899 = vst [vmem:[#allocation8 + $0x258] sm:$0xff] %v771
    %900 = vst [vmem:[#allocation8 + $0x260] sm:$0xff] %v772
    %901 = vst [vmem:[#allocation8 + $0x268] sm:$0xff] %v773
    %902 = vst [vmem:[#allocation8 + $0x270] sm:$0xff] %v774
    %903 = vst [vmem:[#allocation8 + $0x278] sm:$0xff] %v775
    %904 = vst [vmem:[#allocation8 + $0x280] sm:$0xff] %v776
    %905 = vst [vmem:[#allocation8 + $0x288] sm:$0xff] %v777
    %906 = vst [vmem:[#allocation8 + $0x290] sm:$0xff] %v778
    %907 = vst [vmem:[#allocation8 + $0x298] sm:$0xff] %v779
    %908 = vst [vmem:[#allocation8 + $0x2a0] sm:$0xff] %v780
    %909 = vst [vmem:[#allocation8 + $0x2a8] sm:$0xff] %v781
    %910 = vst [vmem:[#allocation8 + $0x2b0] sm:$0xff] %v782
    %911 = vst [vmem:[#allocation8 + $0x2b8] sm:$0xff] %v783
    %912 = vst [vmem:[#allocation8 + $0x2c0] sm:$0xff] %v784
    %913 = vst [vmem:[#allocation8 + $0x2c8] sm:$0xff] %v785
    %914 = vst [vmem:[#allocation8 + $0x2d0] sm:$0xff] %v786
    %915 = vst [vmem:[#allocation8 + $0x2d8] sm:$0xff] %v787
    %916 = vst [vmem:[#allocation8 + $0x2e0] sm:$0xff] %v788
    %917 = vst [vmem:[#allocation8 + $0x2e8] sm:$0xff] %v789
    %918 = vst [vmem:[#allocation8 + $0x2f0] sm:$0xff] %v790
    %919 = vst [vmem:[#allocation8 + $0x2f8] sm:$0xff] %v791
    %920 = vst [vmem:[#allocation8 + $0x300] sm:$0xff] %v792
    %921 = vst [vmem:[#allocation8 + $0x308] sm:$0xff] %v793
    %922 = vst [vmem:[#allocation8 + $0x310] sm:$0xff] %v794
    %923 = vst [vmem:[#allocation8 + $0x318] sm:$0xff] %v795
    %924 = vst [vmem:[#allocation8 + $0x320] sm:$0xff] %v796
    %925 = vst [vmem:[#allocation8 + $0x328] sm:$0xff] %v797
    %926 = vst [vmem:[#allocation8 + $0x330] sm:$0xff] %v798
    %927 = vst [vmem:[#allocation8 + $0x338] sm:$0xff] %v799
    %928 = vst [vmem:[#allocation8 + $0x340] sm:$0xff] %v800
    %929 = vst [vmem:[#allocation8 + $0x348] sm:$0xff] %v801
    %930 = vst [vmem:[#allocation8 + $0x350] sm:$0xff] %v802
    %931 = vst [vmem:[#allocation8 + $0x358] sm:$0xff] %v803
    %932 = vst [vmem:[#allocation8 + $0x360] sm:$0xff] %v804
    %933 = vst [vmem:[#allocation8 + $0x368] sm:$0xff] %v805
    %934 = vst [vmem:[#allocation8 + $0x370] sm:$0xff] %v806
    %935 = vst [vmem:[#allocation8 + $0x378] sm:$0xff] %v807
    %936 = vst [vmem:[#allocation8 + $0x380] sm:$0xff] %v808
    %937 = vst [vmem:[#allocation8 + $0x388] sm:$0xff] %v809
    %938 = vst [vmem:[#allocation8 + $0x390] sm:$0xff] %v810
    %939 = vst [vmem:[#allocation8 + $0x398] sm:$0xff] %v811
    %940 = vst [vmem:[#allocation8 + $0x3a0] sm:$0xff] %v812
    %941 = vst [vmem:[#allocation8 + $0x3a8] sm:$0xff] %v813
    %942 = vst [vmem:[#allocation8 + $0x3b0] sm:$0xff] %v814
    %943 = vst [vmem:[#allocation8 + $0x3b8] sm:$0xff] %v815
    %944 = vst [vmem:[#allocation8 + $0x3c0] sm:$0xff] %v816
    %945 = vst [vmem:[#allocation8 + $0x3c8] sm:$0xff] %v817
    %946 = vst [vmem:[#allocation8 + $0x3d0] sm:$0xff] %v818
    %947 = vst [vmem:[#allocation8 + $0x3d8] sm:$0xff] %v819
    %948 = vst [vmem:[#allocation8 + $0x3e0] sm:$0xff] %v820
    %949 = vst [vmem:[#allocation8 + $0x3e8] sm:$0xff] %v821
    %950 = vst [vmem:[#allocation8 + $0x3f0] sm:$0xff] %v822
    %951 = vst [vmem:[#allocation8 + $0x3f8] sm:$0xff] %v823
    // Predicated region
    $region26: #{tpu_custom_call.1} parent=1 // pred_check
      _
    $region27: #{tpu_custom_call.1} parent=1 // pred_check_branch
      %953 = sbr.rel (0) target = $region29
    $region28: #{tpu_custom_call.1} parent=1 // pred_region
      %s955 = ssub.s32 16384, 16384
      %956 = vsyncadd [#allocation4], %s955
      %s957 = sshll.u32 [#allocation8], 4
      %s958 = int_to_ptr.vmem [resolvable:$true] %s957
      %963 = dma.vmem_to_hbm [thread:$0]  %s958, 16384, %s3, [#allocation4], 512, 512, 32
    $region29: #{tpu_custom_call.1} parent=1 // pred_fallthru
      _
    // Predicated region
    $region30: #{tpu_custom_call.1} parent=1 // pred_check
      _
    $region31: #{tpu_custom_call.1} parent=1 // pred_check_branch
      %965 = sbr.rel (0) target = $region33
    $region32: #{tpu_custom_call.1} parent=1 // pred_region
      %966 = dma.done [#allocation4], 16384
    $region33: #{tpu_custom_call.1} parent=1 // pred_fallthru
      _
    %967 = vsyncpa [#allocation3], 1
    %968 = vsyncpa [#allocation6], 1
    %969 = vsyncpa [#allocation4], 1

</llo_original>
